<compile_context>
chip_gen: v7x
topology: tpu7x:2x2x1
jax: 0.10.0
libtpu: 0.0.40
codegen_flags: <defaults>
</compile_context>

<pallas_src>
import functools

import jax
import jax.numpy as jnp
from jax.experimental import pallas as pl
from jax.experimental.pallas import tpu as pltpu

LANE = 128


def _round_up(x, m):
    return (x + m - 1) // m * m


def mlp_kernel(x_ref, w1_ref, b1_ref, w2_ref, b2_ref, w3_ref, b3_ref, o_ref):
    # x arrives f32 from HBM; cast to bf16 in-kernel for the MXU operand,
    # accumulate in f32.  Bias adds / ReLU stay f32 (safe on v5e).
    x = x_ref[...].astype(jnp.bfloat16)
    # fc1 + ReLU
    h1 = jnp.dot(x, w1_ref[...], preferred_element_type=jnp.float32)
    h1 = jnp.maximum(h1 + b1_ref[...], 0.0)
    # fc2 + ReLU
    h2 = jnp.dot(h1.astype(jnp.bfloat16), w2_ref[...],
                 preferred_element_type=jnp.float32)
    h2 = jnp.maximum(h2 + b2_ref[...], 0.0)
    # fc3: lane-padded (H2, 128) weight lives only in VMEM; just the first C
    # logits are biased and stored (masked store, negligible under DMA slack).
    out = jnp.dot(h2.astype(jnp.bfloat16), w3_ref[...],
                  preferred_element_type=jnp.float32)
    C = o_ref.shape[-1]
    o_ref[...] = (out[:, :C] + b3_ref[...]).astype(o_ref.dtype)


def prepare_params(params):
    """One-time parameter prep (hoisted out of the per-call path).

    params: f32 weights already transposed to (in, out):
        w1 (D,128), b1 (1,128), w2 (128,64), b2 (1,64), w3 (64,C), b3 (1,C)
    Returns bf16 matmul weights (w3 lane-padded to 128) and f32 biases.
    """
    H2, C = params["w3"].shape
    Cp = _round_up(C, LANE)
    w3_p = jnp.zeros((H2, Cp), jnp.float32).at[:, :C].set(params["w3"])
    return {
        "w1": params["w1"].astype(jnp.bfloat16),
        "b1": params["b1"].astype(jnp.float32),
        "w2": params["w2"].astype(jnp.bfloat16),
        "b2": params["b2"].astype(jnp.float32),
        "w3": w3_p.astype(jnp.bfloat16),            # (H2, Cp) lane-padded
        "b3": params["b3"].astype(jnp.float32),     # (1, C) unpadded
    }


@functools.partial(jax.jit, static_argnames=("batch_tile",))
def audio_classifier_ann(x, prep, *, batch_tile=1024):
    """Forward pass of AudioClassifierANN via one fused Pallas kernel.

    x: (B, input_size) float32.  prep: output of prepare_params().
    batch_tile: primary tuning knob; sweep 1024/2048/4096 (v6e: 2048 is a good
    default; v5e amortizes at 512-2048; keep >= 2 grid steps on v7x).
    """
    B, D = x.shape
    H1 = prep["w1"].shape[1]
    H2 = prep["w2"].shape[1]
    Cp = prep["w3"].shape[1]
    C = prep["b3"].shape[1]

    # --- tile selection (no host-side padding of x; Pallas masks edge blocks) ---
    B16 = _round_up(max(B, 1), 16)
    if B16 <= batch_tile:
        tile = B16
        # v7x megacore: keep >= 2 parallel grid steps for large one-tile batches.
        if tile >= 2048:
            tile = _round_up(pl.cdiv(tile, 2), 16)
    else:
        tile = batch_tile
    grid = (pl.cdiv(B, tile),)

    n_rows = grid[0] * tile
    flops = 2 * n_rows * (D * H1 + H1 * H2 + H2 * Cp)
    bytes_accessed = (
        B * D * 4 + B * C * 4                                  # f32 x in, f32 logits out
        + (prep["w1"].size + prep["w2"].size + prep["w3"].size) * 2   # bf16 weights
        + (prep["b1"].size + prep["b2"].size + prep["b3"].size) * 4   # f32 biases
    )

    # Weights/biases are tiny (<100 KB total): every grid step gets the full
    # tensor as a single resident block.
    full = lambda shape: pl.BlockSpec(shape, lambda i: tuple(0 for _ in shape))

    return pl.pallas_call(
        mlp_kernel,
        out_shape=jax.ShapeDtypeStruct((B, C), jnp.float32),
        grid=grid,
        in_specs=[
            pl.BlockSpec((tile, D), lambda i: (i, 0)),  # x tile (f32; cast in-kernel)
            full((D, H1)),    # w1  bf16
            full((1, H1)),    # b1  f32
            full((H1, H2)),   # w2  bf16
            full((1, H2)),    # b2  f32
            full((H2, Cp)),   # w3  bf16, lane-padded (VMEM only)
            full((1, C)),     # b3  f32, unpadded
        ],
        out_specs=pl.BlockSpec((tile, C), lambda i: (i, 0)),
        compiler_params=pltpu.CompilerParams(
            dimension_semantics=("parallel",),
        ),
        cost_estimate=pl.CostEstimate(
            flops=flops, transcendentals=0, bytes_accessed=bytes_accessed),
    )(x, prep["w1"], prep["b1"], prep["w2"], prep["b2"], prep["w3"], prep["b3"])


def init_params(key, input_size, num_classes):
    """Deterministic init mimicking nn.Linear default (uniform +-1/sqrt(fan_in)).

    Weights are returned already transposed to (in_features, out_features).
    """
    dims = [(input_size, 128), (128, 64), (64, num_classes)]
    params = {}
    for idx, (fan_in, fan_out) in enumerate(dims, start=1):
        key, kw, kb = jax.random.split(key, 3)
        bound = 1.0 / jnp.sqrt(jnp.float32(fan_in))
        params[f"w{idx}"] = jax.random.uniform(
            kw, (fan_in, fan_out), jnp.float32, minval=-bound, maxval=bound)
        params[f"b{idx}"] = jax.random.uniform(
            kb, (1, fan_out), jnp.float32, minval=-bound, maxval=bound)
    return params


def reference_forward(x, params):
    """Pure-JAX reference with the same bf16-operand / f32-accumulate recipe."""
    w1 = params["w1"].astype(jnp.bfloat16)
    w2 = params["w2"].astype(jnp.bfloat16)
    w3 = params["w3"].astype(jnp.bfloat16)
    h1 = jnp.dot(x.astype(jnp.bfloat16), w1,
                 preferred_element_type=jnp.float32) + params["b1"]
    h1 = jnp.maximum(h1, 0.0)
    h2 = jnp.dot(h1.astype(jnp.bfloat16), w2,
                 preferred_element_type=jnp.float32) + params["b2"]
    h2 = jnp.maximum(h2, 0.0)
    return jnp.dot(h2.astype(jnp.bfloat16), w3,
                   preferred_element_type=jnp.float32) + params["b3"]


if __name__ == "__main__":
    key = jax.random.PRNGKey(0)
    input_size = 64      # e.g. MFCC-style audio feature vector
    num_classes = 10

    k_x, k_p, k_x2 = jax.random.split(key, 3)
    params = init_params(k_p, input_size, num_classes)
    prep = prepare_params(params)   # one-time weight cast / pad

    # small batch: single-step grid
    batch = 16
    x = jax.random.normal(k_x, (batch, input_size), jnp.float32)
    out = jax.block_until_ready(audio_classifier_ann(x, prep))
    ref = reference_forward(x, params)
    assert out.shape == (batch, num_classes)
    assert jnp.allclose(out, ref, atol=2e-3, rtol=2e-3), "mismatch vs reference (small batch)"

    # non-multiple batch with a small tile: multi-step "parallel" grid plus a
    # masked ragged edge block (no host-side x padding, no post-kernel slice).
    batch2 = 300
    x2 = jax.random.normal(k_x2, (batch2, input_size), jnp.float32)
    out2 = jax.block_until_ready(audio_classifier_ann(x2, prep, batch_tile=128))
    ref2 = reference_forward(x2, params)
    assert out2.shape == (batch2, num_classes)
    assert jnp.allclose(out2, ref2, atol=2e-3, rtol=2e-3), "mismatch vs reference (large batch)"

    print("KERNEL_OK")
</pallas_src>

<mosaic_0001>
module attributes {stable_mosaic.version = 11 : i64} {
  func.func @mlp_kernel(%arg0: i32, %arg1: memref<16x64xf32, #tpu.memory_space<vmem>>, %arg2: memref<64x128xbf16, #tpu.memory_space<vmem>>, %arg3: memref<1x128xf32, #tpu.memory_space<vmem>>, %arg4: memref<128x64xbf16, #tpu.memory_space<vmem>>, %arg5: memref<1x64xf32, #tpu.memory_space<vmem>>, %arg6: memref<64x128xbf16, #tpu.memory_space<vmem>>, %arg7: memref<1x10xf32, #tpu.memory_space<vmem>>, %arg8: memref<16x10xf32, #tpu.memory_space<vmem>>) attributes {dimension_semantics = [#tpu.dimension_semantics<parallel>], iteration_bounds = array<i64: 1>, scalar_prefetch = 0 : i64, scratch_operands = 0 : i64, tpu.core_type = #tpu.core_type<tc>, window_params = [{transform_indices = @transform_0, window_bounds = array<i64: 16, 64>}, {pipeline_mode = #tpu.pipeline_mode<synchronous>, transform_indices = @transform_1, window_bounds = array<i64: 64, 128>}, {pipeline_mode = #tpu.pipeline_mode<synchronous>, transform_indices = @transform_2, window_bounds = array<i64: 1, 128>}, {pipeline_mode = #tpu.pipeline_mode<synchronous>, transform_indices = @transform_3, window_bounds = array<i64: 128, 64>}, {pipeline_mode = #tpu.pipeline_mode<synchronous>, transform_indices = @transform_4, window_bounds = array<i64: 1, 64>}, {pipeline_mode = #tpu.pipeline_mode<synchronous>, transform_indices = @transform_5, window_bounds = array<i64: 64, 128>}, {pipeline_mode = #tpu.pipeline_mode<synchronous>, transform_indices = @transform_6, window_bounds = array<i64: 1, 10>}, {transform_indices = @transform_7, window_bounds = array<i64: 16, 10>}]} {
    %c0 = arith.constant 0 : index
    %c0_0 = arith.constant 0 : index
    %0 = vector.load %arg1[%c0, %c0_0] : memref<16x64xf32, #tpu.memory_space<vmem>>, vector<16x64xf32>
    %1 = arith.truncf %0 : vector<16x64xf32> to vector<16x64xbf16>
    %c0_1 = arith.constant 0 : index
    %c0_2 = arith.constant 0 : index
    %2 = vector.load %arg2[%c0_1, %c0_2] : memref<64x128xbf16, #tpu.memory_space<vmem>>, vector<64x128xbf16>
    %cst = arith.constant dense<0.000000e+00> : vector<16x128xf32>
    %3 = tpu.matmul %1, %2, %cst {dimension_numbers = #tpu.dot_dimension_numbers<[1], [0], [0], [1], [0, 0, 1, 1], [], []>} : vector<16x64xbf16>, vector<64x128xbf16>, vector<16x128xf32> -> vector<16x128xf32>
    %c0_3 = arith.constant 0 : index
    %c0_4 = arith.constant 0 : index
    %4 = vector.load %arg3[%c0_3, %c0_4] : memref<1x128xf32, #tpu.memory_space<vmem>>, vector<1x128xf32>
    %5 = vector.broadcast %4 : vector<1x128xf32> to vector<16x128xf32>
    %6 = arith.addf %3, %5 : vector<16x128xf32>
    %cst_5 = arith.constant 0.000000e+00 : f32
    %7 = vector.broadcast %cst_5 : f32 to vector<16x128xf32>
    %8 = arith.maximumf %6, %7 : vector<16x128xf32>
    %9 = arith.truncf %8 : vector<16x128xf32> to vector<16x128xbf16>
    %c0_6 = arith.constant 0 : index
    %c0_7 = arith.constant 0 : index
    %10 = vector.load %arg4[%c0_6, %c0_7] : memref<128x64xbf16, #tpu.memory_space<vmem>>, vector<128x64xbf16>
    %cst_8 = arith.constant dense<0.000000e+00> : vector<16x64xf32>
    %11 = tpu.matmul %9, %10, %cst_8 {dimension_numbers = #tpu.dot_dimension_numbers<[1], [0], [0], [1], [0, 0, 1, 1], [], []>} : vector<16x128xbf16>, vector<128x64xbf16>, vector<16x64xf32> -> vector<16x64xf32>
    %c0_9 = arith.constant 0 : index
    %c0_10 = arith.constant 0 : index
    %12 = vector.load %arg5[%c0_9, %c0_10] : memref<1x64xf32, #tpu.memory_space<vmem>>, vector<1x64xf32>
    %13 = vector.broadcast %12 : vector<1x64xf32> to vector<16x64xf32>
    %14 = arith.addf %11, %13 : vector<16x64xf32>
    %cst_11 = arith.constant 0.000000e+00 : f32
    %15 = vector.broadcast %cst_11 : f32 to vector<16x64xf32>
    %16 = arith.maximumf %14, %15 : vector<16x64xf32>
    %17 = arith.truncf %16 : vector<16x64xf32> to vector<16x64xbf16>
    %c0_12 = arith.constant 0 : index
    %c0_13 = arith.constant 0 : index
    %18 = vector.load %arg6[%c0_12, %c0_13] : memref<64x128xbf16, #tpu.memory_space<vmem>>, vector<64x128xbf16>
    %cst_14 = arith.constant dense<0.000000e+00> : vector<16x128xf32>
    %19 = tpu.matmul %17, %18, %cst_14 {dimension_numbers = #tpu.dot_dimension_numbers<[1], [0], [0], [1], [0, 0, 1, 1], [], []>} : vector<16x64xbf16>, vector<64x128xbf16>, vector<16x128xf32> -> vector<16x128xf32>
    %20 = vector.extract_strided_slice %19 {offsets = [0, 0], sizes = [16, 10], strides = [1, 1]} : vector<16x128xf32> to vector<16x10xf32>
    %c0_15 = arith.constant 0 : index
    %c0_16 = arith.constant 0 : index
    %21 = vector.load %arg7[%c0_15, %c0_16] : memref<1x10xf32, #tpu.memory_space<vmem>>, vector<1x10xf32>
    %22 = vector.broadcast %21 : vector<1x10xf32> to vector<16x10xf32>
    %23 = arith.addf %20, %22 : vector<16x10xf32>
    %c0_17 = arith.constant 0 : index
    %c0_18 = arith.constant 0 : index
    %24 = vector.load %arg8[%c0_17, %c0_18] : memref<16x10xf32, #tpu.memory_space<vmem>>, vector<16x10xf32>
    tpu.vector_store %arg8[%c0_17, %c0_18], %23 {strides = array<i32>} : memref<16x10xf32, #tpu.memory_space<vmem>>, vector<16x10xf32>,
    return
  }
  func.func @transform_0(%arg0: i32) -> (i32, i32) {
    %c0_i32 = arith.constant 0 : i32
    %c0_i32_0 = arith.constant 0 : i32
    return %arg0, %c0_i32 : i32, i32
  }
  func.func @transform_1(%arg0: i32) -> (i32, i32) {
    %c0_i32 = arith.constant 0 : i32
    %c0_i32_0 = arith.constant 0 : i32
    %c0_i32_1 = arith.constant 0 : i32
    return %c0_i32, %c0_i32_0 : i32, i32
  }
  func.func @transform_2(%arg0: i32) -> (i32, i32) {
    %c0_i32 = arith.constant 0 : i32
    %c0_i32_0 = arith.constant 0 : i32
    %c0_i32_1 = arith.constant 0 : i32
    return %c0_i32, %c0_i32_0 : i32, i32
  }
  func.func @transform_3(%arg0: i32) -> (i32, i32) {
    %c0_i32 = arith.constant 0 : i32
    %c0_i32_0 = arith.constant 0 : i32
    %c0_i32_1 = arith.constant 0 : i32
    return %c0_i32, %c0_i32_0 : i32, i32
  }
  func.func @transform_4(%arg0: i32) -> (i32, i32) {
    %c0_i32 = arith.constant 0 : i32
    %c0_i32_0 = arith.constant 0 : i32
    %c0_i32_1 = arith.constant 0 : i32
    return %c0_i32, %c0_i32_0 : i32, i32
  }
  func.func @transform_5(%arg0: i32) -> (i32, i32) {
    %c0_i32 = arith.constant 0 : i32
    %c0_i32_0 = arith.constant 0 : i32
    %c0_i32_1 = arith.constant 0 : i32
    return %c0_i32, %c0_i32_0 : i32, i32
  }
  func.func @transform_6(%arg0: i32) -> (i32, i32) {
    %c0_i32 = arith.constant 0 : i32
    %c0_i32_0 = arith.constant 0 : i32
    %c0_i32_1 = arith.constant 0 : i32
    return %c0_i32, %c0_i32_0 : i32, i32
  }
  func.func @transform_7(%arg0: i32) -> (i32, i32) {
    %c0_i32 = arith.constant 0 : i32
    %c0_i32_0 = arith.constant 0 : i32
    return %arg0, %c0_i32 : i32, i32
  }
}

</mosaic_0001>

<llo_original>
// kernel: audio_classifier_ann.1
$region0: #{audio_classifier_ann.1}
  #allocation0 [shape = 'u32[]', space=smem, size = 0x4, offset = 0x4, fixed_abs, tag = 'smem constant byte address 0x4 - core index']
  #allocation1 [shape = 'u32[144,128]{1,0:T(1,128)}', space=vmem, size = 0x12000, scoped, tag = 'internal scratch']
  %s0 = inlined_call_operand.vmem [shape: f32[16,64], index: 0, kind: input, shape index: {}]
  %s1 = inlined_call_operand.vmem [shape: bf16[64,128], index: 1, kind: input, shape index: {}]
  %s2 = inlined_call_operand.vmem [shape: f32[1,128], index: 2, kind: input, shape index: {}]
  %s3 = inlined_call_operand.vmem [shape: bf16[128,64], index: 3, kind: input, shape index: {}]
  %s4 = inlined_call_operand.vmem [shape: f32[1,64], index: 4, kind: input, shape index: {}]
  %s5 = inlined_call_operand.vmem [shape: bf16[64,128], index: 5, kind: input, shape index: {}]
  %s6 = inlined_call_operand.vmem [shape: f32[1,10], index: 6, kind: input, shape index: {}]
  %s7 = inlined_call_operand.hbm [shape: f32[16,10], index: 7, kind: output, shape index: {}]
  %s8 = sld [smem:[#allocation0]]
  $region38: #{audio_classifier_ann.1} parent=0
    _
  %s10 = ssub.s32 1, %s8
  %s11 = scalar_select 0, %s10, %s8
  $region1: #{audio_classifier_ann.1} parent=0
    #allocation2 [shape = 'u8[8192]{0}', space=vmem, size = 0x2000, scoped, tag = 'output window, operand 0, single buffered']
    #allocation3 [shape = 's32[1]{0}', space=sflag, size = 0x4, scoped, tag = 'scoped memory for audio_classifier_ann.1']
    %12 = vsyncpa [#allocation3], 0
    // Predicated region
    $region2: #{audio_classifier_ann.1} parent=1 // pred_check
      _
    $region3: #{audio_classifier_ann.1} parent=1 // pred_check_branch
      %14 = sbr.rel (0) target = $region5
    $region4: #{audio_classifier_ann.1} parent=1 // pred_region
      _
    $region5: #{audio_classifier_ann.1} parent=1 // pred_fallthru
      _
    // Predicated region
    $region6: #{audio_classifier_ann.1} parent=1 // pred_check
      _
    $region7: #{audio_classifier_ann.1} parent=1 // pred_check_branch
      %16 = sbr.rel (0) target = $region9
    $region8: #{audio_classifier_ann.1} parent=1 // pred_region
      _
    $region9: #{audio_classifier_ann.1} parent=1 // pred_fallthru
      _
    // Predicated region
    $region10: #{audio_classifier_ann.1} parent=1 // pred_check
      _
    $region11: #{audio_classifier_ann.1} parent=1 // pred_check_branch
      %18 = sbr.rel (0) target = $region13
    $region12: #{audio_classifier_ann.1} parent=1 // pred_region
      _
    $region13: #{audio_classifier_ann.1} parent=1 // pred_fallthru
      _
    // Predicated region
    $region14: #{audio_classifier_ann.1} parent=1 // pred_check
      _
    $region15: #{audio_classifier_ann.1} parent=1 // pred_check_branch
      %20 = sbr.rel (0) target = $region17
    $region16: #{audio_classifier_ann.1} parent=1 // pred_region
      _
    $region17: #{audio_classifier_ann.1} parent=1 // pred_fallthru
      _
    // Predicated region
    $region18: #{audio_classifier_ann.1} parent=1 // pred_check
      _
    $region19: #{audio_classifier_ann.1} parent=1 // pred_check_branch
      %22 = sbr.rel (0) target = $region21
    $region20: #{audio_classifier_ann.1} parent=1 // pred_region
      _
    $region21: #{audio_classifier_ann.1} parent=1 // pred_fallthru
      _
    // Predicated region
    $region22: #{audio_classifier_ann.1} parent=1 // pred_check
      _
    $region23: #{audio_classifier_ann.1} parent=1 // pred_check_branch
      %24 = sbr.rel (0) target = $region25
    $region24: #{audio_classifier_ann.1} parent=1 // pred_region
      _
    $region25: #{audio_classifier_ann.1} parent=1 // pred_fallthru
      _
    // Predicated region
    $region26: #{audio_classifier_ann.1} parent=1 // pred_check
      _
    $region27: #{audio_classifier_ann.1} parent=1 // pred_check_branch
      %26 = sbr.rel (0) target = $region29
    $region28: #{audio_classifier_ann.1} parent=1 // pred_region
      _
    $region29: #{audio_classifier_ann.1} parent=1 // pred_fallthru
      _
    %v28 = vld [vmem:[%s0] sm:$0xff]
    %v29 = vld [vmem:[%s0 + $0x8] sm:$0xff]
    %v30 = vpack.c.bf16 %v29, %v28
    %v31 = vld [vmem:[%s1] sm:$0xf]
    %v32 = vld [vmem:[%s1 + $0x4] sm:$0xf]
    %v33 = vld [vmem:[%s1 + $0x8] sm:$0xf]
    %v34 = vld [vmem:[%s1 + $0xc] sm:$0xf]
    %v35 = vld [vmem:[%s1 + $0x10] sm:$0xf]
    %v36 = vld [vmem:[%s1 + $0x14] sm:$0xf]
    %v37 = vld [vmem:[%s1 + $0x18] sm:$0xf]
    %v38 = vld [vmem:[%s1 + $0x1c] sm:$0xf]
    %v39 = vld [vmem:[%s2] sm:$0x1]
    %v41 = vlaneseq
    %v42 = vshrl.u32 %v41, 7
    %v43 = vsub.s32 0, %v42
    %v44 = vrot.slane %v39, %v43
    %v54 = vunpack.c.l.b16 %v31
    %v55 = vunpack.c.l.b16 %v32
    %v56 = vunpack.c.l.b16 %v33
    %v57 = vunpack.c.l.b16 %v34
    %v58 = vunpack.c.l.b16 %v35
    %v59 = vunpack.c.l.b16 %v36
    %v60 = vunpack.c.l.b16 %v37
    %v61 = vunpack.c.l.b16 %v38
    %v62 = vpack.c.b16 %v55, %v54
    %v63 = vpack.c.b16 %v57, %v56
    %v64 = vpack.c.b16 %v59, %v58
    %v65 = vpack.c.b16 %v61, %v60
    %vm70 = vcmask 523264
    %v72 = vsel %vm70, %v30, 0
    %74 = vmatprep.subr.bf16.mxu0 0
    %75 = vmatpush1.bf16.msra.mxu0 %v62
    %76 = vmatprep.subr.bf16.mxu0 0
    %77 = vmatpush1.bf16.msra.mxu0 %v63
    %78 = vmatprep.subr.bf16.mxu0 0
    %79 = vmatpush1.bf16.msra.mxu0 %v64
    %80 = vmatprep.subr.bf16.mxu0 0
    %81 = vmatpush1.bf16.msra.mxu0 %v65
    %82 = vmatprep.subr.bf16.mxu0 0
    %83 = vmatpush1.bf16.msra.mxu0 0
    %84 = vmatprep.subr.bf16.mxu0 0
    %85 = vmatpush1.bf16.msra.mxu0 0
    %86 = vmatprep.subr.bf16.mxu0 0
    %87 = vmatpush1.bf16.msra.mxu0 0
    %88 = vmatprep.subr.bf16.mxu0 0
    %89 = vmatpush1.bf16.msra.mxu0 0
    %90 = vmatprep.subr.bf16.mxu0 0
    %91 = vmatpush1.bf16.msra.mxu0 0
    %92 = vmatprep.subr.bf16.mxu0 0
    %93 = vmatpush1.bf16.msra.mxu0 0
    %94 = vmatprep.subr.bf16.mxu0 0
    %95 = vmatpush1.bf16.msra.mxu0 0
    %96 = vmatprep.subr.bf16.mxu0 0
    %97 = vmatpush1.bf16.msra.mxu0 0
    %98 = vmatprep.subr.bf16.mxu0 0
    %99 = vmatpush1.bf16.msra.mxu0 0
    %100 = vmatprep.subr.bf16.mxu0 0
    %101 = vmatpush1.bf16.msra.mxu0 0
    %102 = vmatprep.subr.bf16.mxu0 0
    %103 = vmatpush1.bf16.msra.mxu0 0
    %104 = vmatprep.subr.bf16.mxu0 0
    %105 = vmatpush1.bf16.msra.mxu0 0
    %106 = vmatprep.mubr.bf16.mxu0 0
    %107 = vmatmul.mubr.bf16.gmra.mrb[0].mxu0 %v72
    %v108 = vpop.f32.mrb[0].mxu0
    %v109 = vadd.f32 %v44, %v108
    %v110 = vpop.f32.mrb[0].mxu0
    %v111 = vpop.f32.mrb[0].mxu0
    %v112 = vadd.f32 %v44, %v111
    %v113 = vpop.f32.mrb[0].mxu0
    %114 = vdwg.mxu0
    %v115 = vmax.f32 %v109, 0.0
    %v116 = vmax.f32 %v112, 0.0
    %v117 = vpack.c.bf16 %v116, %v115
    %v118 = vld [vmem:[%s3] sm:$0xf]
    %v119 = vld [vmem:[%s3 + $0x4] sm:$0xf]
    %v120 = vld [vmem:[%s3 + $0x8] sm:$0xf]
    %v121 = vld [vmem:[%s3 + $0xc] sm:$0xf]
    %v122 = vld [vmem:[%s3 + $0x10] sm:$0xf]
    %v123 = vld [vmem:[%s3 + $0x14] sm:$0xf]
    %v124 = vld [vmem:[%s3 + $0x18] sm:$0xf]
    %v125 = vld [vmem:[%s3 + $0x1c] sm:$0xf]
    %v126 = vld [vmem:[%s3 + $0x20] sm:$0xf]
    %v127 = vld [vmem:[%s3 + $0x24] sm:$0xf]
    %v128 = vld [vmem:[%s3 + $0x28] sm:$0xf]
    %v129 = vld [vmem:[%s3 + $0x2c] sm:$0xf]
    %v130 = vld [vmem:[%s3 + $0x30] sm:$0xf]
    %v131 = vld [vmem:[%s3 + $0x34] sm:$0xf]
    %v132 = vld [vmem:[%s3 + $0x38] sm:$0xf]
    %v133 = vld [vmem:[%s3 + $0x3c] sm:$0xf]
    %v134 = vld [vmem:[%s4] sm:$0x1]
    %v136 = vlaneseq
    %v137 = vshrl.u32 %v136, 7
    %v138 = vsub.s32 0, %v137
    %v139 = vrot.slane %v134, %v138
    %v157 = vunpack.c.l.b16 %v118
    %v158 = vunpack.c.l.b16 %v119
    %v159 = vunpack.c.l.b16 %v120
    %v160 = vunpack.c.l.b16 %v121
    %v161 = vunpack.c.l.b16 %v122
    %v162 = vunpack.c.l.b16 %v123
    %v163 = vunpack.c.l.b16 %v124
    %v164 = vunpack.c.l.b16 %v125
    %v165 = vunpack.c.l.b16 %v126
    %v166 = vunpack.c.l.b16 %v127
    %v167 = vunpack.c.l.b16 %v128
    %v168 = vunpack.c.l.b16 %v129
    %v169 = vunpack.c.l.b16 %v130
    %v170 = vunpack.c.l.b16 %v131
    %v171 = vunpack.c.l.b16 %v132
    %v172 = vunpack.c.l.b16 %v133
    %v173 = vpack.c.b16 %v158, %v157
    %v174 = vpack.c.b16 %v160, %v159
    %v175 = vpack.c.b16 %v162, %v161
    %v176 = vpack.c.b16 %v164, %v163
    %v177 = vpack.c.b16 %v166, %v165
    %v178 = vpack.c.b16 %v168, %v167
    %v179 = vpack.c.b16 %v170, %v169
    %v180 = vpack.c.b16 %v172, %v171
    %189 = vmatprep.subr.bf16.mxu0 0
    %190 = vmatpush1.bf16.msra.mxu0 %v173
    %191 = vmatprep.subr.bf16.mxu0 0
    %192 = vmatpush1.bf16.msra.mxu0 %v174
    %193 = vmatprep.subr.bf16.mxu0 0
    %194 = vmatpush1.bf16.msra.mxu0 %v175
    %195 = vmatprep.subr.bf16.mxu0 0
    %196 = vmatpush1.bf16.msra.mxu0 %v176
    %197 = vmatprep.subr.bf16.mxu0 0
    %198 = vmatpush1.bf16.msra.mxu0 %v177
    %199 = vmatprep.subr.bf16.mxu0 0
    %200 = vmatpush1.bf16.msra.mxu0 %v178
    %201 = vmatprep.subr.bf16.mxu0 0
    %202 = vmatpush1.bf16.msra.mxu0 %v179
    %203 = vmatprep.subr.bf16.mxu0 0
    %204 = vmatpush1.bf16.msra.mxu0 %v180
    %205 = vmatprep.subr.bf16.mxu0 0
    %206 = vmatpush1.bf16.msra.mxu0 0
    %207 = vmatprep.subr.bf16.mxu0 0
    %208 = vmatpush1.bf16.msra.mxu0 0
    %209 = vmatprep.subr.bf16.mxu0 0
    %210 = vmatpush1.bf16.msra.mxu0 0
    %211 = vmatprep.subr.bf16.mxu0 0
    %212 = vmatpush1.bf16.msra.mxu0 0
    %213 = vmatprep.subr.bf16.mxu0 0
    %214 = vmatpush1.bf16.msra.mxu0 0
    %215 = vmatprep.subr.bf16.mxu0 0
    %216 = vmatpush1.bf16.msra.mxu0 0
    %217 = vmatprep.subr.bf16.mxu0 0
    %218 = vmatpush1.bf16.msra.mxu0 0
    %219 = vmatprep.subr.bf16.mxu0 0
    %220 = vmatpush1.bf16.msra.mxu0 0
    %221 = vmatprep.mubr.bf16.mxu0 0
    %222 = vmatmul.mubr.bf16.gmra.mrb[0].mxu0 %v117
    %v223 = vpop.f32.mrb[0].mxu0
    %v224 = vadd.f32 %v139, %v223
    %v225 = vpop.f32.mrb[0].mxu0
    %v226 = vpop.f32.mrb[0].mxu0
    %v227 = vadd.f32 %v139, %v226
    %v228 = vpop.f32.mrb[0].mxu0
    %229 = vdwg.mxu0
    %v230 = vmax.f32 %v224, 0.0
    %v231 = vmax.f32 %v227, 0.0
    %v232 = vpack.c.bf16 %v231, %v230
    %v233 = vld [vmem:[%s5] sm:$0xf]
    %v234 = vld [vmem:[%s5 + $0x4] sm:$0xf]
    %v235 = vld [vmem:[%s5 + $0x8] sm:$0xf]
    %v236 = vld [vmem:[%s5 + $0xc] sm:$0xf]
    %v237 = vld [vmem:[%s5 + $0x10] sm:$0xf]
    %v238 = vld [vmem:[%s5 + $0x14] sm:$0xf]
    %v239 = vld [vmem:[%s5 + $0x18] sm:$0xf]
    %v240 = vld [vmem:[%s5 + $0x1c] sm:$0xf]
    %v249 = vunpack.c.l.b16 %v233
    %v250 = vunpack.c.l.b16 %v234
    %v251 = vunpack.c.l.b16 %v235
    %v252 = vunpack.c.l.b16 %v236
    %v253 = vunpack.c.l.b16 %v237
    %v254 = vunpack.c.l.b16 %v238
    %v255 = vunpack.c.l.b16 %v239
    %v256 = vunpack.c.l.b16 %v240
    %v257 = vpack.c.b16 %v250, %v249
    %v258 = vpack.c.b16 %v252, %v251
    %v259 = vpack.c.b16 %v254, %v253
    %v260 = vpack.c.b16 %v256, %v255
    %v266 = vsel %vm70, %v232, 0
    %268 = vmatprep.subr.bf16.mxu0 0
    %269 = vmatpush1.bf16.msra.mxu0 %v257
    %270 = vmatprep.subr.bf16.mxu0 0
    %271 = vmatpush1.bf16.msra.mxu0 %v258
    %272 = vmatprep.subr.bf16.mxu0 0
    %273 = vmatpush1.bf16.msra.mxu0 %v259
    %274 = vmatprep.subr.bf16.mxu0 0
    %275 = vmatpush1.bf16.msra.mxu0 %v260
    %276 = vmatprep.subr.bf16.mxu0 0
    %277 = vmatpush1.bf16.msra.mxu0 0
    %278 = vmatprep.subr.bf16.mxu0 0
    %279 = vmatpush1.bf16.msra.mxu0 0
    %280 = vmatprep.subr.bf16.mxu0 0
    %281 = vmatpush1.bf16.msra.mxu0 0
    %282 = vmatprep.subr.bf16.mxu0 0
    %283 = vmatpush1.bf16.msra.mxu0 0
    %284 = vmatprep.subr.bf16.mxu0 0
    %285 = vmatpush1.bf16.msra.mxu0 0
    %286 = vmatprep.subr.bf16.mxu0 0
    %287 = vmatpush1.bf16.msra.mxu0 0
    %288 = vmatprep.subr.bf16.mxu0 0
    %289 = vmatpush1.bf16.msra.mxu0 0
    %290 = vmatprep.subr.bf16.mxu0 0
    %291 = vmatpush1.bf16.msra.mxu0 0
    %292 = vmatprep.subr.bf16.mxu0 0
    %293 = vmatpush1.bf16.msra.mxu0 0
    %294 = vmatprep.subr.bf16.mxu0 0
    %295 = vmatpush1.bf16.msra.mxu0 0
    %296 = vmatprep.subr.bf16.mxu0 0
    %297 = vmatpush1.bf16.msra.mxu0 0
    %298 = vmatprep.subr.bf16.mxu0 0
    %299 = vmatpush1.bf16.msra.mxu0 0
    %300 = vmatprep.mubr.bf16.mxu0 0
    %301 = vmatmul.mubr.bf16.gmra.mrb[0].mxu0 %v266
    %v302 = vpop.f32.mrb[0].mxu0
    %v303 = vadd.f32 0.0, %v302
    %v304 = vpop.f32.mrb[0].mxu0
    %v305 = vpop.f32.mrb[0].mxu0
    %v306 = vadd.f32 0.0, %v305
    %v307 = vpop.f32.mrb[0].mxu0
    %308 = vdwg.mxu0
    %v309 = vld [vmem:[%s6] sm:$0x1]
    %v311 = vlaneseq
    %v312 = vshrl.u32 %v311, 7
    %v313 = vsub.s32 0, %v312
    %v314 = vrot.slane %v309, %v313
    %v316 = vadd.f32 %v303, %v314
    %v317 = vadd.f32 %v306, %v314
    %vm318 = vcmask 80896
    %319 = vst.msk [vmem:[#allocation2] sm:$0xff] %vm318, %v316
    %320 = vst.msk [vmem:[#allocation2 + $0x8] sm:$0xff] %vm318, %v317
    // Predicated region
    $region30: #{audio_classifier_ann.1} parent=1 // pred_check
      _
    $region31: #{audio_classifier_ann.1} parent=1 // pred_check_branch
      %322 = sbr.rel (0) target = $region33
    $region32: #{audio_classifier_ann.1} parent=1 // pred_region
      %s324 = ssub.s32 256, 256
      %325 = vsyncadd [#allocation3], %s324
      %s326 = sshll.u32 [#allocation2], 4
      %s327 = int_to_ptr.vmem [resolvable:$true] %s326
      %332 = dma.vmem_to_hbm [thread:$0]  %s327, 256, %s7, [#allocation3], 128, 128, 8
    $region33: #{audio_classifier_ann.1} parent=1 // pred_fallthru
      _
    // Predicated region
    $region34: #{audio_classifier_ann.1} parent=1 // pred_check
      _
    $region35: #{audio_classifier_ann.1} parent=1 // pred_check_branch
      %334 = sbr.rel (0) target = $region37
    $region36: #{audio_classifier_ann.1} parent=1 // pred_region
      %335 = dma.done [#allocation3], 256
    $region37: #{audio_classifier_ann.1} parent=1 // pred_fallthru
      _
    %336 = vsyncpa [#allocation3], 1

</llo_original>
